<compile_context>
chip_gen: v5e
topology: v5e:2x2
jax: 0.10.0
libtpu: 0.0.40
codegen_flags: <defaults>
</compile_context>

<pallas_src>
import jax
import jax.numpy as jnp
from jax.experimental import pallas as pl
from jax.experimental.pallas import tpu as pltpu


def _round_up(n: int, m: int) -> int:
    return ((n + m - 1) // m) * m


def _cdiv(a: int, b: int) -> int:
    return (a + b - 1) // b


def _vmem_capacity_bytes() -> int:
    """Physical VMEM of the current TPU generation (fallback: v7x's 64 MiB)."""
    try:
        cap = int(pltpu.get_tpu_info().vmem_capacity_bytes)
        if cap > 0:
            return cap
    except Exception:
        pass
    return 64 << 20  # conservative (v7x per-TensorCore)


# ----------------------------- kernels --------------------------------------


def mlp_kernel(x_ref, w1_ref, b1_ref, w2_ref, b2_ref, o_ref):
    """Resident-weight path: the whole contraction dim handled in one step."""
    # In-kernel f32->bf16 cast (VPU op, hidden under DMA/MXU slack).
    x = x_ref[...].astype(jnp.bfloat16)
    # fc1 on the MXU, f32 accumulation.
    h = jnp.dot(x, w1_ref[...], preferred_element_type=jnp.float32)
    # bias + ReLU in f32 on the VPU.
    h = jnp.maximum(h + b1_ref[...], 0.0)
    # fc2 on the MXU; OUT is 128-lane dense so the store is an unmasked vst.
    y = jnp.dot(h.astype(jnp.bfloat16), w2_ref[...],
                preferred_element_type=jnp.float32)
    o_ref[...] = (y + b2_ref[...]).astype(o_ref.dtype)


def mlp_kernel_ktiled(x_ref, w1_ref, b1_ref, w2_ref, b2_ref, o_ref, acc_ref):
    """K-tiled path: w1 streamed over the contraction dim (large weights / v7x)."""
    k = pl.program_id(1)

    @pl.when(k == 0)
    def _init():
        acc_ref[...] = jnp.zeros_like(acc_ref)

    x = x_ref[...].astype(jnp.bfloat16)
    acc_ref[...] += jnp.dot(x, w1_ref[...], preferred_element_type=jnp.float32)

    @pl.when(k == pl.num_programs(1) - 1)
    def _finalize():
        h = jnp.maximum(acc_ref[...] + b1_ref[...], 0.0)
        y = jnp.dot(h.astype(jnp.bfloat16), w2_ref[...],
                    preferred_element_type=jnp.float32)
        o_ref[...] = (y + b2_ref[...]).astype(o_ref.dtype)


# ----------------------------- wrapper ---------------------------------------


def fully_connected_nn(x, w1, b1, w2, b2, *, block_batch=1024, block_k=512,
                       force_k_tiling=False):
    """Forward pass of FullyConnectedNN:  relu(x @ w1 + b1) @ w2 + b2.

    x : (B, input_size) float32
    w1: (input_size, hidden_size)   b1: (hidden_size,)
    w2: (hidden_size, output_size)  b2: (output_size,)
    Returns (B, output_size) in x.dtype.  MXU inputs are bf16 with f32
    accumulation (PyTorch-f32 parity to ~1e-2 relative).
    """
    B, in_size = x.shape
    hidden = w1.shape[1]
    out_size = w2.shape[1]
    out_dtype = x.dtype

    HID = _round_up(hidden, 128)      # lane-dense hidden (fc1 N / fc2 K)
    OUT = _round_up(out_size, 128)    # lane-dense output store (unmasked vst)

    cap = _vmem_capacity_bytes()
    budget = max(cap - (16 << 20), 24 << 20)   # headroom for Mosaic scratch

    # Resident bf16 weights + f32 biases (single-buffered via pl.Buffered(1)).
    resident_w_bytes = in_size * HID * 2 + HID * OUT * 2 + (HID + OUT) * 4
    use_ktile = force_k_tiling or resident_w_bytes > budget // 2

    if use_ktile:
        BK = max(128, _round_up(block_k, 128))
        # Shrink BK until the double-buffered w1 K-slabs take <= ~budget/4.
        while BK > 128 and 2 * BK * HID * 2 > budget // 4:
            BK //= 2
        BK = max(128, (BK // 128) * 128)
        IN = _round_up(in_size, BK)
        w_bytes = 2 * BK * HID * 2 + HID * OUT * 2 + (HID + OUT) * 4
        # per-row VMEM: x (f32, double-buffered) + out (bf16, dbl) + f32 acc.
        row_bytes = 2 * BK * 4 + 2 * OUT * 2 + HID * 4
    else:
        BK = in_size
        IN = in_size                   # x feature dim left unpadded
        w_bytes = resident_w_bytes
        row_bytes = 2 * in_size * 4 + 2 * OUT * 2

    # Batch tile: multiple of 16 (bf16 sublane packing), sized to the VMEM
    # budget, and chosen so batch padding stays small.
    tb_cap = max(16, min(block_batch, (budget - w_bytes) // max(row_bytes, 1)))
    tb_cap = max(16, (tb_cap // 16) * 16)
    B16 = _round_up(B, 16)
    n_bt = _cdiv(B16, tb_cap)
    TB = _round_up(_cdiv(B16, n_bt), 16)
    B_pad = n_bt * TB

    # x stays f32; pad only the batch tail (and K dim when K-tiling).
    if B_pad != B or IN != in_size:
        x_p = jnp.pad(x, ((0, B_pad - B), (0, IN - in_size)))
    else:
        x_p = x

    # Weights/biases: small one-time pads + bf16 casts in the wrapper.
    # Zero padding is exact: padded x cols / w1 rows contribute 0, padded b1
    # cols are 0 and ReLU(0)=0 so padded hidden units contribute 0 to fc2, and
    # padded output columns are sliced off below.
    w1_p = w1
    if IN != in_size or HID != hidden:
        w1_p = jnp.pad(w1, ((0, IN - in_size), (0, HID - hidden)))
    w1_p = w1_p.astype(jnp.bfloat16)
    w2_p = w2
    if HID != hidden or OUT != out_size:
        w2_p = jnp.pad(w2, ((0, HID - hidden), (0, OUT - out_size)))
    w2_p = w2_p.astype(jnp.bfloat16)
    b1_p = jnp.pad(b1, (0, HID - hidden)).astype(jnp.float32).reshape(1, HID)
    b2_p = jnp.pad(b2, (0, OUT - out_size)).astype(jnp.float32).reshape(1, OUT)

    footprint = w_bytes + TB * row_bytes
    vmem_limit = int(min(cap - (4 << 20), max(footprint + (8 << 20), 32 << 20)))

    resident = dict(pipeline_mode=pl.Buffered(1))   # no double-buffering for
                                                    # constant-index operands

    if not use_ktile:
        out_padded = pl.pallas_call(
            mlp_kernel,
            out_shape=jax.ShapeDtypeStruct((B_pad, OUT), jnp.bfloat16),
            grid=(B_pad // TB,),
            in_specs=[
                pl.BlockSpec((TB, IN), lambda i: (i, 0)),              # x (f32)
                pl.BlockSpec((IN, HID), lambda i: (0, 0), **resident),  # w1
                pl.BlockSpec((1, HID), lambda i: (0, 0), **resident),   # b1
                pl.BlockSpec((HID, OUT), lambda i: (0, 0), **resident),  # w2
                pl.BlockSpec((1, OUT), lambda i: (0, 0), **resident),   # b2
            ],
            out_specs=pl.BlockSpec((TB, OUT), lambda i: (i, 0)),
            compiler_params=pltpu.CompilerParams(
                dimension_semantics=("parallel",),
                vmem_limit_bytes=vmem_limit,
            ),
        )(x_p, w1_p, b1_p, w2_p, b2_p)
    else:
        out_padded = pl.pallas_call(
            mlp_kernel_ktiled,
            out_shape=jax.ShapeDtypeStruct((B_pad, OUT), jnp.bfloat16),
            grid=(B_pad // TB, IN // BK),
            in_specs=[
                pl.BlockSpec((TB, BK), lambda i, k: (i, k)),            # x
                pl.BlockSpec((BK, HID), lambda i, k: (k, 0)),           # w1 (streamed)
                pl.BlockSpec((1, HID), lambda i, k: (0, 0), **resident),  # b1
                pl.BlockSpec((HID, OUT), lambda i, k: (0, 0), **resident),  # w2
                pl.BlockSpec((1, OUT), lambda i, k: (0, 0), **resident),  # b2
            ],
            out_specs=pl.BlockSpec((TB, OUT), lambda i, k: (i, 0)),
            scratch_shapes=[pltpu.VMEM((TB, HID), jnp.float32)],
            compiler_params=pltpu.CompilerParams(
                dimension_semantics=("parallel", "arbitrary"),
                vmem_limit_bytes=vmem_limit,
            ),
        )(x_p, w1_p, b1_p, w2_p, b2_p)

    # bf16 output keeps the lane-dense store while halving HBM writeback;
    # slice the true columns and cast back here.
    return out_padded[:B, :out_size].astype(out_dtype)


# ------------------------------- test ----------------------------------------


def _reference(x, w1, b1, w2, b2):
    return jnp.maximum(x @ w1 + b1, 0.0) @ w2 + b2


def _make_params(key, input_size, hidden_size, output_size):
    # Deterministic init mimicking nn.Linear default (uniform +/- 1/sqrt(fan_in)).
    k1, k2, k3, k4 = jax.random.split(key, 4)
    lim1 = 1.0 / jnp.sqrt(jnp.float32(input_size))
    lim2 = 1.0 / jnp.sqrt(jnp.float32(hidden_size))
    w1 = jax.random.uniform(k1, (input_size, hidden_size), jnp.float32, -lim1, lim1)
    b1 = jax.random.uniform(k2, (hidden_size,), jnp.float32, -lim1, lim1)
    w2 = jax.random.uniform(k3, (hidden_size, output_size), jnp.float32, -lim2, lim2)
    b2 = jax.random.uniform(k4, (output_size,), jnp.float32, -lim2, lim2)
    return w1, b1, w2, b2


if __name__ == "__main__":
    key = jax.random.PRNGKey(0)

    # --- Test 1: module-default small shape, resident-weight path -----------
    kp, kx, key = jax.random.split(key, 3)
    batch, input_size, hidden_size, output_size = 8, 32, 64, 1
    w1, b1, w2, b2 = _make_params(kp, input_size, hidden_size, output_size)
    x = jax.random.normal(kx, (batch, input_size), jnp.float32)

    out = jax.block_until_ready(jax.jit(fully_connected_nn)(x, w1, b1, w2, b2))
    ref = _reference(x, w1, b1, w2, b2)
    assert out.shape == (batch, output_size)
    assert jnp.allclose(out, ref, atol=2e-2, rtol=2e-2), (
        f"max abs err = {jnp.max(jnp.abs(out - ref))}")

    # --- Test 2: force the K-tiled (streamed-w1) path at small shapes --------
    # (this is the path large hidden/input sizes take on v7x's 64 MiB VMEM)
    kp, kx = jax.random.split(key, 2)
    batch, input_size, hidden_size, output_size = 40, 320, 96, 3
    w1, b1, w2, b2 = _make_params(kp, input_size, hidden_size, output_size)
    x = jax.random.normal(kx, (batch, input_size), jnp.float32)

    ktiled_fn = jax.jit(
        lambda *a: fully_connected_nn(*a, block_k=128, force_k_tiling=True))
    out = jax.block_until_ready(ktiled_fn(x, w1, b1, w2, b2))
    ref = _reference(x, w1, b1, w2, b2)
    assert out.shape == (batch, output_size)
    assert jnp.allclose(out, ref, atol=3e-2, rtol=3e-2), (
        f"max abs err = {jnp.max(jnp.abs(out - ref))}")

    print("KERNEL_OK")
</pallas_src>

<mosaic_0001>
module attributes {stable_mosaic.version = 11 : i64} {
  func.func @mlp_kernel(%arg0: i32, %arg1: memref<16x32xf32, #tpu.memory_space<vmem>>, %arg2: memref<32x128xbf16, #tpu.memory_space<vmem>>, %arg3: memref<1x128xf32, #tpu.memory_space<vmem>>, %arg4: memref<128x128xbf16, #tpu.memory_space<vmem>>, %arg5: memref<1x128xf32, #tpu.memory_space<vmem>>, %arg6: memref<16x128xbf16, #tpu.memory_space<vmem>>) attributes {dimension_semantics = [#tpu.dimension_semantics<parallel>], iteration_bounds = array<i64: 1>, scalar_prefetch = 0 : i64, scratch_operands = 0 : i64, tpu.core_type = #tpu.core_type<tc>, window_params = [{transform_indices = @transform_0, window_bounds = array<i64: 16, 32>}, {pipeline_mode = #tpu.pipeline_mode<synchronous>, transform_indices = @transform_1, window_bounds = array<i64: 32, 128>}, {pipeline_mode = #tpu.pipeline_mode<synchronous>, transform_indices = @transform_2, window_bounds = array<i64: 1, 128>}, {pipeline_mode = #tpu.pipeline_mode<synchronous>, transform_indices = @transform_3, window_bounds = array<i64: 128, 128>}, {pipeline_mode = #tpu.pipeline_mode<synchronous>, transform_indices = @transform_4, window_bounds = array<i64: 1, 128>}, {transform_indices = @transform_5, window_bounds = array<i64: 16, 128>}]} {
    %c0 = arith.constant 0 : index
    %c0_0 = arith.constant 0 : index
    %0 = vector.load %arg1[%c0, %c0_0] : memref<16x32xf32, #tpu.memory_space<vmem>>, vector<16x32xf32>
    %1 = arith.truncf %0 : vector<16x32xf32> to vector<16x32xbf16>
    %c0_1 = arith.constant 0 : index
    %c0_2 = arith.constant 0 : index
    %2 = vector.load %arg2[%c0_1, %c0_2] : memref<32x128xbf16, #tpu.memory_space<vmem>>, vector<32x128xbf16>
    %cst = arith.constant dense<0.000000e+00> : vector<16x128xf32>
    %3 = tpu.matmul %1, %2, %cst {dimension_numbers = #tpu.dot_dimension_numbers<[1], [0], [0], [1], [0, 0, 1, 1], [], []>} : vector<16x32xbf16>, vector<32x128xbf16>, vector<16x128xf32> -> vector<16x128xf32>
    %c0_3 = arith.constant 0 : index
    %c0_4 = arith.constant 0 : index
    %4 = vector.load %arg3[%c0_3, %c0_4] : memref<1x128xf32, #tpu.memory_space<vmem>>, vector<1x128xf32>
    %5 = vector.broadcast %4 : vector<1x128xf32> to vector<16x128xf32>
    %6 = arith.addf %3, %5 : vector<16x128xf32>
    %cst_5 = arith.constant 0.000000e+00 : f32
    %7 = vector.broadcast %cst_5 : f32 to vector<16x128xf32>
    %8 = arith.maximumf %6, %7 : vector<16x128xf32>
    %9 = arith.truncf %8 : vector<16x128xf32> to vector<16x128xbf16>
    %c0_6 = arith.constant 0 : index
    %c0_7 = arith.constant 0 : index
    %10 = vector.load %arg4[%c0_6, %c0_7] : memref<128x128xbf16, #tpu.memory_space<vmem>>, vector<128x128xbf16>
    %cst_8 = arith.constant dense<0.000000e+00> : vector<16x128xf32>
    %11 = tpu.matmul %9, %10, %cst_8 {dimension_numbers = #tpu.dot_dimension_numbers<[1], [0], [0], [1], [0, 0, 1, 1], [], []>} : vector<16x128xbf16>, vector<128x128xbf16>, vector<16x128xf32> -> vector<16x128xf32>
    %c0_9 = arith.constant 0 : index
    %c0_10 = arith.constant 0 : index
    %12 = vector.load %arg5[%c0_9, %c0_10] : memref<1x128xf32, #tpu.memory_space<vmem>>, vector<1x128xf32>
    %13 = vector.broadcast %12 : vector<1x128xf32> to vector<16x128xf32>
    %14 = arith.addf %11, %13 : vector<16x128xf32>
    %15 = arith.truncf %14 : vector<16x128xf32> to vector<16x128xbf16>
    %c0_11 = arith.constant 0 : index
    %c0_12 = arith.constant 0 : index
    %16 = vector.load %arg6[%c0_11, %c0_12] : memref<16x128xbf16, #tpu.memory_space<vmem>>, vector<16x128xbf16>
    tpu.vector_store %arg6[%c0_11, %c0_12], %15 {strides = array<i32>} : memref<16x128xbf16, #tpu.memory_space<vmem>>, vector<16x128xbf16>,
    return
  }
  func.func @transform_0(%arg0: i32) -> (i32, i32) {
    %c0_i32 = arith.constant 0 : i32
    %c0_i32_0 = arith.constant 0 : i32
    return %arg0, %c0_i32 : i32, i32
  }
  func.func @transform_1(%arg0: i32) -> (i32, i32) {
    %c0_i32 = arith.constant 0 : i32
    %c0_i32_0 = arith.constant 0 : i32
    %c0_i32_1 = arith.constant 0 : i32
    return %c0_i32, %c0_i32_0 : i32, i32
  }
  func.func @transform_2(%arg0: i32) -> (i32, i32) {
    %c0_i32 = arith.constant 0 : i32
    %c0_i32_0 = arith.constant 0 : i32
    %c0_i32_1 = arith.constant 0 : i32
    return %c0_i32, %c0_i32_0 : i32, i32
  }
  func.func @transform_3(%arg0: i32) -> (i32, i32) {
    %c0_i32 = arith.constant 0 : i32
    %c0_i32_0 = arith.constant 0 : i32
    %c0_i32_1 = arith.constant 0 : i32
    return %c0_i32, %c0_i32_0 : i32, i32
  }
  func.func @transform_4(%arg0: i32) -> (i32, i32) {
    %c0_i32 = arith.constant 0 : i32
    %c0_i32_0 = arith.constant 0 : i32
    %c0_i32_1 = arith.constant 0 : i32
    return %c0_i32, %c0_i32_0 : i32, i32
  }
  func.func @transform_5(%arg0: i32) -> (i32, i32) {
    %c0_i32 = arith.constant 0 : i32
    %c0_i32_0 = arith.constant 0 : i32
    return %arg0, %c0_i32 : i32, i32
  }
}

</mosaic_0001>

<llo_original>
// kernel: fully_connected_nn.1
$region0: #{fully_connected_nn.1}
  #allocation0 [shape = 'u32[]', space=smem, size = 0x4, offset = 0x4, fixed_abs, tag = 'smem constant byte address 0x4 - core index']
  #allocation1 [shape = 'u32[72,128]{1,0:T(1,128)}', space=vmem, size = 0x9000, scoped, tag = 'internal scratch']
  %s0 = inlined_call_operand.vmem [shape: f32[16,32], index: 0, kind: input, shape index: {}]
  %s1 = inlined_call_operand.vmem [shape: bf16[32,128], index: 1, kind: input, shape index: {}]
  %s2 = inlined_call_operand.vmem [shape: f32[1,128], index: 2, kind: input, shape index: {}]
  %s3 = inlined_call_operand.vmem [shape: bf16[128,128], index: 3, kind: input, shape index: {}]
  %s4 = inlined_call_operand.vmem [shape: f32[1,128], index: 4, kind: input, shape index: {}]
  %s5 = inlined_call_operand.vmem [shape: bf16[16,128], index: 5, kind: output, shape index: {}]
  %s6 = sld [smem:[#allocation0]]
  $region30: #{fully_connected_nn.1} parent=0
    _
  %s8 = ssub.s32 1, %s6
  %s9 = scalar_select 0, %s8, %s6
  // Predicated region
  $region2: #{fully_connected_nn.1} parent=0 // pred_check
    _
  $region3: #{fully_connected_nn.1} parent=0 // pred_check_branch
    %11 = sbr.rel (0) target = $region5
  $region4: #{fully_connected_nn.1} parent=0 // pred_region
    _
  $region5: #{fully_connected_nn.1} parent=0 // pred_fallthru
    _
  // Predicated region
  $region6: #{fully_connected_nn.1} parent=0 // pred_check
    _
  $region7: #{fully_connected_nn.1} parent=0 // pred_check_branch
    %13 = sbr.rel (0) target = $region9
  $region8: #{fully_connected_nn.1} parent=0 // pred_region
    _
  $region9: #{fully_connected_nn.1} parent=0 // pred_fallthru
    _
  // Predicated region
  $region10: #{fully_connected_nn.1} parent=0 // pred_check
    _
  $region11: #{fully_connected_nn.1} parent=0 // pred_check_branch
    %15 = sbr.rel (0) target = $region13
  $region12: #{fully_connected_nn.1} parent=0 // pred_region
    _
  $region13: #{fully_connected_nn.1} parent=0 // pred_fallthru
    _
  // Predicated region
  $region14: #{fully_connected_nn.1} parent=0 // pred_check
    _
  $region15: #{fully_connected_nn.1} parent=0 // pred_check_branch
    %17 = sbr.rel (0) target = $region17
  $region16: #{fully_connected_nn.1} parent=0 // pred_region
    _
  $region17: #{fully_connected_nn.1} parent=0 // pred_fallthru
    _
  // Predicated region
  $region18: #{fully_connected_nn.1} parent=0 // pred_check
    _
  $region19: #{fully_connected_nn.1} parent=0 // pred_check_branch
    %19 = sbr.rel (0) target = $region21
  $region20: #{fully_connected_nn.1} parent=0 // pred_region
    _
  $region21: #{fully_connected_nn.1} parent=0 // pred_fallthru
    _
  %v21 = vld [vmem:[%s0] sm:$0xff]
  %v22 = vld [vmem:[%s0 + $0x8] sm:$0xff]
  %v23 = vpack.c.bf16 %v22, %v21
  %v24 = vld [vmem:[%s1] sm:$0xf]
  %v25 = vld [vmem:[%s1 + $0x4] sm:$0xf]
  %v26 = vld [vmem:[%s1 + $0x8] sm:$0xf]
  %v27 = vld [vmem:[%s1 + $0xc] sm:$0xf]
  %v28 = vld [vmem:[%s2] sm:$0x1]
  %v30 = vperm.slane %v28, 0
  %v36 = vunpack.c.l.b16 %v24
  %v37 = vunpack.c.l.b16 %v25
  %v38 = vunpack.c.l.b16 %v26
  %v39 = vunpack.c.l.b16 %v27
  %v40 = vpack.c.b16 %v37, %v36
  %v41 = vpack.c.b16 %v39, %v38
  %vm44 = vcmask 261120
  %v46 = vsel %vm44, %v23, 0
  %48 = vmatpush.bf16.msra.mxu0 0
  %49 = vmatpush.bf16.msra.mxu0 0
  %50 = vmatpush.bf16.msra.mxu0 0
  %51 = vmatpush.bf16.msra.mxu0 0
  %52 = vmatpush.bf16.msra.mxu0 0
  %53 = vmatpush.bf16.msra.mxu0 0
  %54 = vmatpush.bf16.msra.mxu0 %v41
  %55 = vmatpush.bf16.msra.mxu0 %v40
  %56 = vmatmul.bf16.gmra.mxu0 %v46
  %v57 = vpop.f32.mrf.mxu0
  %v58 = vadd.f32 %v30, %v57
  %v59 = vpop.f32.mrf.mxu0
  %v60 = vadd.f32 %v30, %v59
  %61 = vdwg.mxu0
  %v62 = vmax.f32 %v58, 0.0
  %v63 = vmax.f32 %v60, 0.0
  %v64 = vpack.c.bf16 %v63, %v62
  %v65 = vld [vmem:[%s3] sm:$0xf]
  %v66 = vld [vmem:[%s3 + $0x4] sm:$0xf]
  %v67 = vld [vmem:[%s3 + $0x8] sm:$0xf]
  %v68 = vld [vmem:[%s3 + $0xc] sm:$0xf]
  %v69 = vld [vmem:[%s3 + $0x10] sm:$0xf]
  %v70 = vld [vmem:[%s3 + $0x14] sm:$0xf]
  %v71 = vld [vmem:[%s3 + $0x18] sm:$0xf]
  %v72 = vld [vmem:[%s3 + $0x1c] sm:$0xf]
  %v73 = vld [vmem:[%s3 + $0x20] sm:$0xf]
  %v74 = vld [vmem:[%s3 + $0x24] sm:$0xf]
  %v75 = vld [vmem:[%s3 + $0x28] sm:$0xf]
  %v76 = vld [vmem:[%s3 + $0x2c] sm:$0xf]
  %v77 = vld [vmem:[%s3 + $0x30] sm:$0xf]
  %v78 = vld [vmem:[%s3 + $0x34] sm:$0xf]
  %v79 = vld [vmem:[%s3 + $0x38] sm:$0xf]
  %v80 = vld [vmem:[%s3 + $0x3c] sm:$0xf]
  %v81 = vld [vmem:[%s4] sm:$0x1]
  %v83 = vperm.slane %v81, 0
  %v101 = vunpack.c.l.b16 %v65
  %v102 = vunpack.c.l.b16 %v66
  %v103 = vunpack.c.l.b16 %v67
  %v104 = vunpack.c.l.b16 %v68
  %v105 = vunpack.c.l.b16 %v69
  %v106 = vunpack.c.l.b16 %v70
  %v107 = vunpack.c.l.b16 %v71
  %v108 = vunpack.c.l.b16 %v72
  %v109 = vunpack.c.l.b16 %v73
  %v110 = vunpack.c.l.b16 %v74
  %v111 = vunpack.c.l.b16 %v75
  %v112 = vunpack.c.l.b16 %v76
  %v113 = vunpack.c.l.b16 %v77
  %v114 = vunpack.c.l.b16 %v78
  %v115 = vunpack.c.l.b16 %v79
  %v116 = vunpack.c.l.b16 %v80
  %v117 = vpack.c.b16 %v102, %v101
  %v118 = vpack.c.b16 %v104, %v103
  %v119 = vpack.c.b16 %v106, %v105
  %v120 = vpack.c.b16 %v108, %v107
  %v121 = vpack.c.b16 %v110, %v109
  %v122 = vpack.c.b16 %v112, %v111
  %v123 = vpack.c.b16 %v114, %v113
  %v124 = vpack.c.b16 %v116, %v115
  %133 = vmatpush.bf16.msra.mxu0 %v124
  %134 = vmatpush.bf16.msra.mxu0 %v123
  %135 = vmatpush.bf16.msra.mxu0 %v122
  %136 = vmatpush.bf16.msra.mxu0 %v121
  %137 = vmatpush.bf16.msra.mxu0 %v120
  %138 = vmatpush.bf16.msra.mxu0 %v119
  %139 = vmatpush.bf16.msra.mxu0 %v118
  %140 = vmatpush.bf16.msra.mxu0 %v117
  %141 = vmatmul.bf16.gmra.mxu0 %v64
  %v142 = vpop.f32.mrf.mxu0
  %v143 = vadd.f32 %v83, %v142
  %v144 = vpop.f32.mrf.mxu0
  %v145 = vadd.f32 %v83, %v144
  %146 = vdwg.mxu0
  %v147 = vpack.c.bf16 %v143, %v143
  %v148 = vpack.c.bf16 %v145, %v145
  %149 = vst [vmem:[%s5] sm:$0xf] %v147
  %150 = vst [vmem:[%s5 + $0x4] sm:$0xf] %v148
  // Predicated region
  $region22: #{fully_connected_nn.1} parent=0 // pred_check
    _
  $region23: #{fully_connected_nn.1} parent=0 // pred_check_branch
    %152 = sbr.rel (0) target = $region25
  $region24: #{fully_connected_nn.1} parent=0 // pred_region
    _
  $region25: #{fully_connected_nn.1} parent=0 // pred_fallthru
    _
  // Predicated region
  $region26: #{fully_connected_nn.1} parent=0 // pred_check
    _
  $region27: #{fully_connected_nn.1} parent=0 // pred_check_branch
    %154 = sbr.rel (0) target = $region29
  $region28: #{fully_connected_nn.1} parent=0 // pred_region
    _
  $region29: #{fully_connected_nn.1} parent=0 // pred_fallthru
    _

</llo_original>
